<compile_context>
chip_gen: v5e
topology: v5e:2x2
jax: 0.10.0
libtpu: 0.0.40
codegen_flags: <defaults>
</compile_context>

<pallas_src>
import math
import jax
import jax.numpy as jnp
from jax.experimental import pallas as pl
from jax.experimental.pallas import tpu as pltpu

# ----------------------- configuration (compile-time constants) --------------
HIDDEN_SIZE      = 64      # hidden_size (backbone pooled dim), small for demo
GP_INPUT_DIM     = 32      # gp_input_dim
NUM_INDUCING     = 128     # num_inducing
NUM_CLASSES      = 3       # num_classes
NUM_CLASSES_PAD  = 128     # lane-dense logits slab; sliced to NUM_CLASSES in the wrapper
BATCH            = 8
GP_KERNEL_SCALE  = 1.0
GP_OUTPUT_BIAS   = 0.0
LAYER_NORM_EPS   = 1e-12
GP_COV_MOMENTUM  = 0.999
GP_COV_RIDGE     = 0.001
GP_INPUT_SCALE   = 1.0 / math.sqrt(GP_KERNEL_SCALE)   # module scales the random features
                                                       # by gp_input_scale (reference quirk)


# ------------------------------- Pallas kernel -------------------------------
def sngp_kernel(x_ref, w_in_ref, ln_g_ref, ln_b_ref, w_rf_ref, b_rf_ref,
                w_out_ref, out_b_ref, prec_ref,
                gp_out_ref, prec_new_ref):
    # gp_inputs = spectral_norm(Linear)(x): bf16 operands on the MXU, f32 accumulation.
    x_bf = x_ref[...].astype(jnp.bfloat16)                               # [B, H]
    z = jnp.dot(x_bf, w_in_ref[...], preferred_element_type=jnp.float32)  # [B, D] f32

    # LayerNorm over the last dim (eps=1e-12, affine). Kept fully in f32.
    mean = jnp.mean(z, axis=-1, keepdims=True)
    var = jnp.mean((z - mean) ** 2, axis=-1, keepdims=True)
    zn = (z - mean) * jax.lax.rsqrt(var + LAYER_NORM_EPS)
    zn = zn * ln_g_ref[...] + ln_b_ref[...]                              # [B, D]

    # random features: cos(zn @ W_rf + b_rf) * gp_input_scale
    phi = jnp.dot(zn.astype(jnp.bfloat16), w_rf_ref[...],
                  preferred_element_type=jnp.float32) + b_rf_ref[...]    # [B, M] f32
    feat = jnp.cos(phi) * GP_INPUT_SCALE                                 # [B, M] f32

    # gp_output = feat @ W_out + gp_output_bias  (lane-dense, Cp = 128)
    gp_out_ref[...] = (jnp.dot(feat.astype(jnp.bfloat16), w_out_ref[...],
                               preferred_element_type=jnp.float32)
                       + out_b_ref[...])                                 # [B, Cp]

    # update_cov: momentum EMA of feat^T feat / batch_size.
    # Contract the batch axis directly — no transposed intermediate, MXU eats it natively.
    # Kept in f32 to protect the covariance estimate.
    prec_mb = jax.lax.dot_general(
        feat, feat,
        dimension_numbers=(((0,), (0,)), ((), ())),
        preferred_element_type=jnp.float32) * (1.0 / float(BATCH))       # [M, M]
    prec_new_ref[...] = (GP_COV_MOMENTUM * prec_ref[...]
                         + (1.0 - GP_COV_MOMENTUM) * prec_mb)


def sngp_forward(x, w_in_bf, ln_g, ln_b, w_rf_bf, b_rf, w_out_bf, out_b_p, prec):
    B = x.shape[0]
    M = w_rf_bf.shape[1]
    C_pad = w_out_bf.shape[1]

    # Single invocation, everything (~0.2 MiB) resident in VMEM: no grid, no
    # PrefetchScalarGridSpec scaffolding, no per-step pipelining overhead.
    # TODO(synk): if batch / num_inducing are scaled to production sizes, add a
    # batch-"parallel" grid axis (2 TCs on v7x) and tile the [M, M] precision update.
    vmem = lambda: pl.BlockSpec(memory_space=pltpu.MemorySpace.VMEM)

    gp_out_pad, prec_new = pl.pallas_call(
        sngp_kernel,
        out_shape=(jax.ShapeDtypeStruct((B, C_pad), jnp.float32),
                   jax.ShapeDtypeStruct((M, M), jnp.float32)),
        in_specs=[vmem() for _ in range(9)],
        out_specs=(vmem(), vmem()),
        # prec (input 8) aliases prec_new (output 1): EMA update happens in place,
        # no second [M, M] HBM allocation / writeback copy.
        input_output_aliases={8: 1},
    )(x, w_in_bf, ln_g, ln_b, w_rf_bf, b_rf, w_out_bf, out_b_p, prec)

    return gp_out_pad[:, :NUM_CLASSES], prec_new


# ----------------------------- pure-JAX reference ----------------------------
def sngp_reference(x, w_in, ln_g, ln_b, w_rf, b_rf, w_out, out_b, prec):
    z = x @ w_in
    mean = z.mean(axis=-1, keepdims=True)
    var = ((z - mean) ** 2).mean(axis=-1, keepdims=True)
    zn = (z - mean) * jax.lax.rsqrt(var + LAYER_NORM_EPS) * ln_g + ln_b
    feat = jnp.cos(zn @ w_rf + b_rf) * GP_INPUT_SCALE
    out = feat @ w_out + out_b
    prec_mb = (feat.T @ feat) / float(x.shape[0])
    prec_new = GP_COV_MOMENTUM * prec + (1.0 - GP_COV_MOMENTUM) * prec_mb
    return out, prec_new


# ----------------------------- parameter setup (glue) -------------------------
def init_params(key):
    k1, k2, k3, k4, k5 = jax.random.split(key, 5)

    # _gp_input_layer: nn.Linear(hidden, gp_input_dim, bias=False), default init
    bound_in = 1.0 / math.sqrt(HIDDEN_SIZE)
    w_in_raw = jax.random.uniform(k1, (GP_INPUT_DIM, HIDDEN_SIZE),
                                  minval=-bound_in, maxval=bound_in,
                                  dtype=jnp.float32)
    # spectral_norm: one power iteration (matches n_power_iterations=1 semantics)
    u = jax.random.normal(k2, (GP_INPUT_DIM,), dtype=jnp.float32)
    u = u / jnp.linalg.norm(u)
    v = w_in_raw.T @ u
    v = v / jnp.linalg.norm(v)
    u = w_in_raw @ v
    u = u / jnp.linalg.norm(u)
    sigma = u @ (w_in_raw @ v)
    w_in = (w_in_raw / sigma).T                       # [H, D], pre-transposed

    # LayerNorm affine params
    ln_g = jnp.ones((1, GP_INPUT_DIM), jnp.float32)
    ln_b = jnp.zeros((1, GP_INPUT_DIM), jnp.float32)

    # _random_feature: Linear(gp_input_dim, num_inducing), frozen
    w_rf = (0.05 * jax.random.normal(k3, (NUM_INDUCING, GP_INPUT_DIM),
                                     dtype=jnp.float32)).T              # [D, M]
    b_rf = jax.random.uniform(k4, (1, NUM_INDUCING),
                              minval=0.0, maxval=2.0 * math.pi,
                              dtype=jnp.float32)

    # _gp_output_layer: Linear(num_inducing, num_classes, bias=False)
    bound_out = 1.0 / math.sqrt(NUM_INDUCING)
    w_out = jax.random.uniform(k5, (NUM_CLASSES, NUM_INDUCING),
                               minval=-bound_out, maxval=bound_out,
                               dtype=jnp.float32).T                     # [M, C]
    out_b = jnp.full((1, NUM_CLASSES), GP_OUTPUT_BIAS, jnp.float32)

    # initial precision matrix = ridge * I
    prec = GP_COV_RIDGE * jnp.eye(NUM_INDUCING, dtype=jnp.float32)

    return w_in, ln_g, ln_b, w_rf, b_rf, w_out, out_b, prec


if __name__ == "__main__":
    key = jax.random.PRNGKey(0)
    kx, kp = jax.random.split(key)

    # TODO(synk): backbone is an arbitrary nn.Module argument; treated as identity —
    # `x` is the pooled backbone output of shape [B, hidden_size].
    x = jax.random.normal(kx, (BATCH, HIDDEN_SIZE), dtype=jnp.float32)
    w_in, ln_g, ln_b, w_rf, b_rf, w_out, out_b, prec = init_params(kp)

    # Pure-f32 reference (evaluated before `prec` is donated to the kernel call).
    ref_out, ref_prec = sngp_reference(x, w_in, ln_g, ln_b, w_rf, b_rf,
                                       w_out, out_b, prec)

    # One-time storage-level prep (outside the per-call hot path):
    #   * bf16 weight copies for the MXU (halves weight DMA, f32 accumulation kept),
    #   * output head zero-padded to a lane-dense 128-wide slab.
    w_in_bf = w_in.astype(jnp.bfloat16)
    w_rf_bf = w_rf.astype(jnp.bfloat16)
    w_out_pad = jnp.zeros((NUM_INDUCING, NUM_CLASSES_PAD), jnp.float32)
    w_out_pad = w_out_pad.at[:, :NUM_CLASSES].set(w_out)
    w_out_bf = w_out_pad.astype(jnp.bfloat16)
    out_b_pad = jnp.zeros((1, NUM_CLASSES_PAD), jnp.float32)
    out_b_pad = out_b_pad.at[:, :NUM_CLASSES].set(out_b)

    fwd = jax.jit(sngp_forward, donate_argnums=(8,))   # donate prec -> true in-place EMA
    gp_output, precision_new = fwd(x, w_in_bf, ln_g, ln_b, w_rf_bf, b_rf,
                                   w_out_bf, out_b_pad, prec)
    jax.block_until_ready((gp_output, precision_new))

    assert gp_output.shape == (BATCH, NUM_CLASSES)
    assert precision_new.shape == (NUM_INDUCING, NUM_INDUCING)
    assert bool(jnp.all(jnp.isfinite(gp_output)))
    # Covariance path is f32 end-to-end inside the kernel -> tight agreement.
    assert bool(jnp.allclose(precision_new, ref_prec, atol=1e-3))
    # Logits use bf16 MXU operands -> loose tolerance vs. pure-f32 reference.
    assert bool(jnp.allclose(gp_output, ref_out, atol=0.5))
    print("KERNEL_OK")
</pallas_src>

<mosaic_0001>
module attributes {stable_mosaic.version = 11 : i64} {
  func.func @sngp_kernel(%arg0: memref<8x64xf32, #tpu.memory_space<vmem>>, %arg1: memref<64x32xbf16, #tpu.memory_space<vmem>>, %arg2: memref<1x32xf32, #tpu.memory_space<vmem>>, %arg3: memref<1x32xf32, #tpu.memory_space<vmem>>, %arg4: memref<32x128xbf16, #tpu.memory_space<vmem>>, %arg5: memref<1x128xf32, #tpu.memory_space<vmem>>, %arg6: memref<128x128xbf16, #tpu.memory_space<vmem>>, %arg7: memref<1x128xf32, #tpu.memory_space<vmem>>, %arg8: memref<128x128xf32, #tpu.memory_space<vmem>>, %arg9: memref<8x128xf32, #tpu.memory_space<vmem>>, %arg10: memref<128x128xf32, #tpu.memory_space<vmem>>) attributes {dimension_semantics = [], scalar_prefetch = 0 : i64, scratch_operands = 0 : i64, tpu.core_type = #tpu.core_type<tc>} {
    %c0 = arith.constant 0 : index
    %c0_0 = arith.constant 0 : index
    %0 = vector.load %arg0[%c0, %c0_0] : memref<8x64xf32, #tpu.memory_space<vmem>>, vector<8x64xf32>
    %1 = arith.truncf %0 : vector<8x64xf32> to vector<8x64xbf16>
    %c0_1 = arith.constant 0 : index
    %c0_2 = arith.constant 0 : index
    %2 = vector.load %arg1[%c0_1, %c0_2] : memref<64x32xbf16, #tpu.memory_space<vmem>>, vector<64x32xbf16>
    %cst = arith.constant dense<0.000000e+00> : vector<8x32xf32>
    %3 = tpu.matmul %1, %2, %cst {dimension_numbers = #tpu.dot_dimension_numbers<[1], [0], [0], [1], [0, 0, 1, 1], [], []>} : vector<8x64xbf16>, vector<64x32xbf16>, vector<8x32xf32> -> vector<8x32xf32>
    %cst_3 = arith.constant dense<0.000000e+00> : vector<8xf32>
    %4 = vector.multi_reduction <add>, %3, %cst_3 [1] : vector<8x32xf32> to vector<8xf32>
    %5 = vector.shape_cast %4 : vector<8xf32> to vector<8x1xf32>
    %cst_4 = arith.constant 3.200000e+01 : f32
    %6 = vector.broadcast %cst_4 : f32 to vector<8x1xf32>
    %7 = arith.divf %5, %6 : vector<8x1xf32>
    %8 = vector.broadcast %7 : vector<8x1xf32> to vector<8x32xf32>
    %9 = arith.subf %3, %8 : vector<8x32xf32>
    %10 = arith.mulf %9, %9 : vector<8x32xf32>
    %cst_5 = arith.constant dense<0.000000e+00> : vector<8xf32>
    %11 = vector.multi_reduction <add>, %10, %cst_5 [1] : vector<8x32xf32> to vector<8xf32>
    %12 = vector.shape_cast %11 : vector<8xf32> to vector<8x1xf32>
    %cst_6 = arith.constant 3.200000e+01 : f32
    %13 = vector.broadcast %cst_6 : f32 to vector<8x1xf32>
    %14 = arith.divf %12, %13 : vector<8x1xf32>
    %15 = vector.broadcast %7 : vector<8x1xf32> to vector<8x32xf32>
    %16 = arith.subf %3, %15 : vector<8x32xf32>
    %cst_7 = arith.constant 9.99999996E-13 : f32
    %17 = vector.broadcast %cst_7 : f32 to vector<8x1xf32>
    %18 = arith.addf %14, %17 : vector<8x1xf32>
    %19 = math.rsqrt %18 : vector<8x1xf32>
    %20 = vector.broadcast %19 : vector<8x1xf32> to vector<8x32xf32>
    %21 = arith.mulf %16, %20 : vector<8x32xf32>
    %c0_8 = arith.constant 0 : index
    %c0_9 = arith.constant 0 : index
    %22 = vector.load %arg2[%c0_8, %c0_9] : memref<1x32xf32, #tpu.memory_space<vmem>>, vector<1x32xf32>
    %23 = vector.broadcast %22 : vector<1x32xf32> to vector<8x32xf32>
    %24 = arith.mulf %21, %23 : vector<8x32xf32>
    %c0_10 = arith.constant 0 : index
    %c0_11 = arith.constant 0 : index
    %25 = vector.load %arg3[%c0_10, %c0_11] : memref<1x32xf32, #tpu.memory_space<vmem>>, vector<1x32xf32>
    %26 = vector.broadcast %25 : vector<1x32xf32> to vector<8x32xf32>
    %27 = arith.addf %24, %26 : vector<8x32xf32>
    %28 = arith.truncf %27 : vector<8x32xf32> to vector<8x32xbf16>
    %c0_12 = arith.constant 0 : index
    %c0_13 = arith.constant 0 : index
    %29 = vector.load %arg4[%c0_12, %c0_13] : memref<32x128xbf16, #tpu.memory_space<vmem>>, vector<32x128xbf16>
    %cst_14 = arith.constant dense<0.000000e+00> : vector<8x128xf32>
    %30 = tpu.matmul %28, %29, %cst_14 {dimension_numbers = #tpu.dot_dimension_numbers<[1], [0], [0], [1], [0, 0, 1, 1], [], []>} : vector<8x32xbf16>, vector<32x128xbf16>, vector<8x128xf32> -> vector<8x128xf32>
    %c0_15 = arith.constant 0 : index
    %c0_16 = arith.constant 0 : index
    %31 = vector.load %arg5[%c0_15, %c0_16] : memref<1x128xf32, #tpu.memory_space<vmem>>, vector<1x128xf32>
    %32 = vector.broadcast %31 : vector<1x128xf32> to vector<8x128xf32>
    %33 = arith.addf %30, %32 : vector<8x128xf32>
    %34 = math.cos %33 : vector<8x128xf32>
    %cst_17 = arith.constant 1.000000e+00 : f32
    %35 = vector.broadcast %cst_17 : f32 to vector<8x128xf32>
    %36 = arith.mulf %34, %35 : vector<8x128xf32>
    %37 = arith.truncf %36 : vector<8x128xf32> to vector<8x128xbf16>
    %c0_18 = arith.constant 0 : index
    %c0_19 = arith.constant 0 : index
    %38 = vector.load %arg6[%c0_18, %c0_19] : memref<128x128xbf16, #tpu.memory_space<vmem>>, vector<128x128xbf16>
    %cst_20 = arith.constant dense<0.000000e+00> : vector<8x128xf32>
    %39 = tpu.matmul %37, %38, %cst_20 {dimension_numbers = #tpu.dot_dimension_numbers<[1], [0], [0], [1], [0, 0, 1, 1], [], []>} : vector<8x128xbf16>, vector<128x128xbf16>, vector<8x128xf32> -> vector<8x128xf32>
    %c0_21 = arith.constant 0 : index
    %c0_22 = arith.constant 0 : index
    %40 = vector.load %arg7[%c0_21, %c0_22] : memref<1x128xf32, #tpu.memory_space<vmem>>, vector<1x128xf32>
    %41 = vector.broadcast %40 : vector<1x128xf32> to vector<8x128xf32>
    %42 = arith.addf %39, %41 : vector<8x128xf32>
    %c0_23 = arith.constant 0 : index
    %c0_24 = arith.constant 0 : index
    %43 = vector.load %arg9[%c0_23, %c0_24] : memref<8x128xf32, #tpu.memory_space<vmem>>, vector<8x128xf32>
    tpu.vector_store %arg9[%c0_23, %c0_24], %42 {strides = array<i32>} : memref<8x128xf32, #tpu.memory_space<vmem>>, vector<8x128xf32>,
    %cst_25 = arith.constant dense<0.000000e+00> : vector<128x128xf32>
    %44 = tpu.matmul %36, %36, %cst_25 {dimension_numbers = #tpu.dot_dimension_numbers<[0], [0], [1], [1], [0, 1, 1, 1], [], []>} : vector<8x128xf32>, vector<8x128xf32>, vector<128x128xf32> -> vector<128x128xf32>
    %cst_26 = arith.constant 1.250000e-01 : f32
    %45 = vector.broadcast %cst_26 : f32 to vector<128x128xf32>
    %46 = arith.mulf %44, %45 : vector<128x128xf32>
    %c0_27 = arith.constant 0 : index
    %c0_28 = arith.constant 0 : index
    %47 = vector.load %arg8[%c0_27, %c0_28] : memref<128x128xf32, #tpu.memory_space<vmem>>, vector<128x128xf32>
    %cst_29 = arith.constant 9.990000e-01 : f32
    %48 = vector.broadcast %cst_29 : f32 to vector<128x128xf32>
    %49 = arith.mulf %48, %47 : vector<128x128xf32>
    %cst_30 = arith.constant 1.000000e-03 : f32
    %50 = vector.broadcast %cst_30 : f32 to vector<128x128xf32>
    %51 = arith.mulf %50, %46 : vector<128x128xf32>
    %52 = arith.addf %49, %51 : vector<128x128xf32>
    %c0_31 = arith.constant 0 : index
    %c0_32 = arith.constant 0 : index
    %53 = vector.load %arg10[%c0_31, %c0_32] : memref<128x128xf32, #tpu.memory_space<vmem>>, vector<128x128xf32>
    tpu.vector_store %arg10[%c0_31, %c0_32], %52 {strides = array<i32>} : memref<128x128xf32, #tpu.memory_space<vmem>>, vector<128x128xf32>,
    return
  }
}

</mosaic_0001>

<llo_original>
// kernel: sngp_forward.1
$region0: #{sngp_forward.1}
  #allocation0 [shape = 'u32[]', space=smem, size = 0x4, offset = 0x4, fixed_abs, tag = 'smem constant byte address 0x4 - core index']
  #allocation1 [shape = 'u32[72,128]{1,0:T(1,128)}', space=vmem, size = 0x9000, scoped, tag = 'internal scratch']
  %s0 = inlined_call_operand.vmem [shape: f32[8,64], index: 0, kind: input, shape index: {}]
  %s1 = inlined_call_operand.vmem [shape: bf16[64,32], index: 1, kind: input, shape index: {}]
  %s2 = inlined_call_operand.vmem [shape: f32[1,32], index: 2, kind: input, shape index: {}]
  %s3 = inlined_call_operand.vmem [shape: f32[1,32], index: 3, kind: input, shape index: {}]
  %s4 = inlined_call_operand.vmem [shape: bf16[32,128], index: 4, kind: input, shape index: {}]
  %s5 = inlined_call_operand.vmem [shape: f32[1,128], index: 5, kind: input, shape index: {}]
  %s6 = inlined_call_operand.hbm [shape: bf16[128,128], index: 6, kind: input, shape index: {}]
  %s7 = inlined_call_operand.vmem [shape: f32[1,128], index: 7, kind: input, shape index: {}]
  %s8 = inlined_call_operand.hbm [shape: f32[128,128], index: 8, kind: input, shape index: {}, may-alias: {8,10}]
  %s9 = inlined_call_operand.vmem [shape: f32[8,128], index: 9, kind: output, shape index: {0}]
  %s10 = inlined_call_operand.hbm [shape: f32[128,128], index: 10, kind: output, shape index: {1}, may-alias: {8,10}]
  %11 = xla_tuple %s9, %s10
  %s12 = sld [smem:[#allocation0]]
  $region62: #{sngp_forward.1} parent=0
    _
  %s14 = ssub.s32 1, %s12
  %s15 = scalar_select 0, %s14, %s12
  $region1: #{sngp_forward.1} parent=0
    #allocation2 [shape = 'u8[32768]{0}', space=vmem, size = 0x8000, scoped, tag = 'input window, operand 6, single buffered']
    #allocation3 [shape = 's32[1]{0}', space=sflag, size = 0x4, scoped, tag = 'scoped memory for sngp_forward.1']
    #allocation4 [shape = 's32[1]{0}', space=sflag, size = 0x4, scoped, tag = 'scoped memory for sngp_forward.1']
    #allocation5 [shape = 'u8[65536]{0}', space=vmem, size = 0x10000, scoped, tag = 'input window, operand 8, single buffered']
    #allocation6 [shape = 's32[1]{0}', space=sflag, size = 0x4, scoped, tag = 'scoped memory for sngp_forward.1']
    #allocation7 [shape = 'u8[65536]{0}', space=vmem, size = 0x10000, scoped, tag = 'output window, operand 1, single buffered']
    %16 = vsyncpa [#allocation3], 0
    %17 = vsyncpa [#allocation6], 0
    %18 = vsyncpa [#allocation4], 0
    // Predicated region
    $region2: #{sngp_forward.1} parent=1 // pred_check
      _
    $region3: #{sngp_forward.1} parent=1 // pred_check_branch
      %20 = sbr.rel (0) target = $region5
    $region4: #{sngp_forward.1} parent=1 // pred_region
      _
    $region5: #{sngp_forward.1} parent=1 // pred_fallthru
      _
    // Predicated region
    $region6: #{sngp_forward.1} parent=1 // pred_check
      _
    $region7: #{sngp_forward.1} parent=1 // pred_check_branch
      %22 = sbr.rel (0) target = $region9
    $region8: #{sngp_forward.1} parent=1 // pred_region
      _
    $region9: #{sngp_forward.1} parent=1 // pred_fallthru
      _
    // Predicated region
    $region10: #{sngp_forward.1} parent=1 // pred_check
      _
    $region11: #{sngp_forward.1} parent=1 // pred_check_branch
      %24 = sbr.rel (0) target = $region13
    $region12: #{sngp_forward.1} parent=1 // pred_region
      _
    $region13: #{sngp_forward.1} parent=1 // pred_fallthru
      _
    // Predicated region
    $region14: #{sngp_forward.1} parent=1 // pred_check
      _
    $region15: #{sngp_forward.1} parent=1 // pred_check_branch
      %26 = sbr.rel (0) target = $region17
    $region16: #{sngp_forward.1} parent=1 // pred_region
      _
    $region17: #{sngp_forward.1} parent=1 // pred_fallthru
      _
    // Predicated region
    $region18: #{sngp_forward.1} parent=1 // pred_check
      _
    $region19: #{sngp_forward.1} parent=1 // pred_check_branch
      %28 = sbr.rel (0) target = $region21
    $region20: #{sngp_forward.1} parent=1 // pred_region
      _
    $region21: #{sngp_forward.1} parent=1 // pred_fallthru
      _
    // Predicated region
    $region22: #{sngp_forward.1} parent=1 // pred_check
      _
    $region23: #{sngp_forward.1} parent=1 // pred_check_branch
      %30 = sbr.rel (0) target = $region25
    $region24: #{sngp_forward.1} parent=1 // pred_region
      _
    $region25: #{sngp_forward.1} parent=1 // pred_fallthru
      _
    // Predicated region
    $region26: #{sngp_forward.1} parent=1 // pred_check
      _
    $region27: #{sngp_forward.1} parent=1 // pred_check_branch
      %32 = sbr.rel (0) target = $region29
    $region28: #{sngp_forward.1} parent=1 // pred_region
      %34 = vsyncadd [#allocation3], 0
      %s35 = sshll.u32 %s6, 4
      %s36 = int_to_ptr.hbm [resolvable:$true] %s35
      %s37 = sshll.u32 [#allocation2], 4
      %s38 = int_to_ptr.vmem [resolvable:$true] %s37
      %43 = dma.hbm_to_vmem [thread:$0]  %s36, 1024, %s38, [#allocation3], 64, 64, 4
    $region29: #{sngp_forward.1} parent=1 // pred_fallthru
      _
    // Predicated region
    $region30: #{sngp_forward.1} parent=1 // pred_check
      _
    $region31: #{sngp_forward.1} parent=1 // pred_check_branch
      %45 = sbr.rel (0) target = $region33
    $region32: #{sngp_forward.1} parent=1 // pred_region
      _
    $region33: #{sngp_forward.1} parent=1 // pred_fallthru
      _
    // Predicated region
    $region34: #{sngp_forward.1} parent=1 // pred_check
      _
    $region35: #{sngp_forward.1} parent=1 // pred_check_branch
      %47 = sbr.rel (0) target = $region37
    $region36: #{sngp_forward.1} parent=1 // pred_region
      %49 = vsyncadd [#allocation6], 0
      %s50 = sshll.u32 %s8, 4
      %s51 = int_to_ptr.hbm [resolvable:$true] %s50
      %s52 = sshll.u32 [#allocation5], 4
      %s53 = int_to_ptr.vmem [resolvable:$true] %s52
      %58 = dma.hbm_to_vmem [thread:$0]  %s51, 2048, %s53, [#allocation6], 128, 128, 8
    $region37: #{sngp_forward.1} parent=1 // pred_fallthru
      _
    // Predicated region
    $region38: #{sngp_forward.1} parent=1 // pred_check
      _
    $region39: #{sngp_forward.1} parent=1 // pred_check_branch
      %60 = sbr.rel (0) target = $region41
    $region40: #{sngp_forward.1} parent=1 // pred_region
      %62 = dma.done [#allocation3], 1024
    $region41: #{sngp_forward.1} parent=1 // pred_fallthru
      _
    // Predicated region
    $region42: #{sngp_forward.1} parent=1 // pred_check
      _
    $region43: #{sngp_forward.1} parent=1 // pred_check_branch
      %64 = sbr.rel (0) target = $region45
    $region44: #{sngp_forward.1} parent=1 // pred_region
      %66 = dma.done [#allocation6], 2048
    $region45: #{sngp_forward.1} parent=1 // pred_fallthru
      _
    %v68 = vld [vmem:[%s0] sm:$0xff]
    %v69 = vpack.c.bf16 %v68, %v68
    %v70 = vld [vmem:[%s1] sm:$0xf]
    %v71 = vld [vmem:[%s1 + $0x4] sm:$0xf]
    %v72 = vld [vmem:[%s1 + $0x8] sm:$0xf]
    %v73 = vld [vmem:[%s1 + $0xc] sm:$0xf]
    %v74 = vld [vmem:[%s1 + $0x10] sm:$0xf]
    %v75 = vld [vmem:[%s1 + $0x14] sm:$0xf]
    %v76 = vld [vmem:[%s1 + $0x18] sm:$0xf]
    %v77 = vld [vmem:[%s1 + $0x1c] sm:$0xf]
    %v86 = vunpack.c.l.b16 %v70
    %v87 = vunpack.c.l.b16 %v71
    %v88 = vunpack.c.l.b16 %v72
    %v89 = vunpack.c.l.b16 %v73
    %v90 = vunpack.c.l.b16 %v74
    %v91 = vunpack.c.l.b16 %v75
    %v92 = vunpack.c.l.b16 %v76
    %v93 = vunpack.c.l.b16 %v77
    %v94 = vpack.c.b16 %v87, %v86
    %v95 = vpack.c.b16 %v89, %v88
    %v96 = vpack.c.b16 %v91, %v90
    %v97 = vpack.c.b16 %v93, %v92
    %vm102 = vcmask 523264
    %v104 = vsel %vm102, %v69, 0
    %106 = vmatpush.bf16.msra.mxu0 0
    %107 = vmatpush.bf16.msra.mxu0 0
    %108 = vmatpush.bf16.msra.mxu0 0
    %109 = vmatpush.bf16.msra.mxu0 0
    %110 = vmatpush.bf16.msra.mxu0 %v97
    %111 = vmatpush.bf16.msra.mxu0 %v96
    %112 = vmatpush.bf16.msra.mxu0 %v95
    %113 = vmatpush.bf16.msra.mxu0 %v94
    %114 = vmatmul.bf16.gmra.mxu0 %v104
    %v115 = vpop.f32.mrf.mxu0
    %v116 = vadd.f32 0.0, %v115
    %v117 = vpop.f32.mrf.mxu0
    %118 = vdwg.mxu0
    %vm119 = vcmask 261120
    %v120 = vsel %vm119, %v116, 0.0
    %121 = vadd.xlane.f32.xlu0 %v120
    %v122 = vpop.xlane.xlu0 %121
    %v123 = vrcp.pop 32.0
    %v124 = vmul.f32 32.0, %v123
    %v125 = vsub.f32 1.0, %v124
    %v126 = vmul.f32 %v123, %v125
    %v127 = vadd.f32 %v123, %v126
    %vm128 = vweird.f32 %v123
    %v129 = vsel %vm128, %v123, %v127
    %v130 = vmul.f32 %v122, %v129
    %v131 = vsub.f32 %v116, %v130
    %v132 = vmul.f32 %v131, %v131
    %v133 = vsel %vm119, %v132, 0.0
    %134 = vadd.xlane.f32.xlu0 %v133
    %v135 = vpop.xlane.xlu0 %134
    %v136 = vmul.f32 %v135, %v129
    %v137 = vadd.f32 %v136, 1e-12
    %v138 = vrsqrt.pop %v137
    %v139 = vmul.f32 %v138, %v137
    %v140 = vmul.f32 %v139, %v138
    %v141 = vmul.f32 0.5, %v140
    %v142 = vsub.f32 1.5, %v141
    %v143 = vmul.f32 %v138, %v142
    %vm144 = vweird.f32 %v137
    %vm145 = vweird.f32 %v138
    %vm146 = vmor %vm144, %vm145
    %v147 = vsel %vm146, %v138, %v143
    %v148 = vmul.f32 %v131, %v147
    %v149 = vld [vmem:[%s2] sm:$0x1]
    %v151 = vperm.slane %v149, 0
    %v153 = vmul.f32 %v148, %v151
    %v154 = vld [vmem:[%s3] sm:$0x1]
    %v156 = vperm.slane %v154, 0
    %v158 = vadd.f32 %v153, %v156
    %v159 = vpack.c.bf16 %v158, %v158
    %v160 = vld [vmem:[%s4] sm:$0xf]
    %v161 = vld [vmem:[%s4 + $0x4] sm:$0xf]
    %v162 = vld [vmem:[%s4 + $0x8] sm:$0xf]
    %v163 = vld [vmem:[%s4 + $0xc] sm:$0xf]
    %v164 = vld [vmem:[%s5] sm:$0x1]
    %v166 = vperm.slane %v164, 0
    %v172 = vunpack.c.l.b16 %v160
    %v173 = vunpack.c.l.b16 %v161
    %v174 = vunpack.c.l.b16 %v162
    %v175 = vunpack.c.l.b16 %v163
    %v176 = vpack.c.b16 %v173, %v172
    %v177 = vpack.c.b16 %v175, %v174
    %v181 = vsel %vm119, %v159, 0
    %183 = vmatpush.bf16.msra.mxu0 0
    %184 = vmatpush.bf16.msra.mxu0 0
    %185 = vmatpush.bf16.msra.mxu0 0
    %186 = vmatpush.bf16.msra.mxu0 0
    %187 = vmatpush.bf16.msra.mxu0 0
    %188 = vmatpush.bf16.msra.mxu0 0
    %189 = vmatpush.bf16.msra.mxu0 %v177
    %190 = vmatpush.bf16.msra.mxu0 %v176
    %191 = vmatmul.bf16.gmra.mxu0 %v181
    %v192 = vpop.f32.mrf.mxu0
    %v193 = vadd.f32 %v166, %v192
    %v194 = vpop.f32.mrf.mxu0
    %195 = vdwg.mxu0
    %v196 = vand.u32 2147483647, %v193
    %vm197 = vcmp.le.f32.partialorder %v196, 0.7853982
    %vm198 = vcmp.lt.s32.totalorder %v193, 0
    %v199 = vand.u32 %v193, 2139095040
    %v200 = vshrl.u32 %v199, 23
    %v201 = vsub.s32 %v200, 127
    %v202 = vand.u32 2147483647, %v193
    %v203 = vand.u32 %v202, 8388607
    %v204 = vor.u32 %v203, 8388608
    %v205 = vsub.s32 0, %v204
    %v206 = vadd.s32 %v201, 1
    %vm207 = vcmp.gt.s32.totalorder %v206, 0
    %v208 = vsel %vm207, %v206, 0
    %v209 = vshrl.u32 %v208, 5
    %v210 = vand.u32 %v208, 31
    %v211 = vsub.s32 32, %v210
    %v212 = vshrl.u32 683565275, %v211
    %v213 = vshll.u32 683565275, %v210
    %v214 = vshrl.u32 2475754826, %v211
    %v215 = vor.u32 %v213, %v214
    %v216 = vshll.u32 2475754826, %v210
    %v217 = vshrl.u32 2131351028, %v211
    %v218 = vor.u32 %v216, %v217
    %v219 = vshll.u32 2131351028, %v210
    %v220 = vshrl.u32 2102212464, %v211
    %v221 = vor.u32 %v219, %v220
    %v222 = vshll.u32 2102212464, %v210
    %v223 = vshrl.u32 920167782, %v211
    %v224 = vor.u32 %v222, %v223
    %v225 = vshll.u32 920167782, %v210
    %v226 = vshrl.u32 1326507024, %v211
    %v227 = vor.u32 %v225, %v226
    %vm228 = vcmp.lt.s32.totalorder %v209, 1
    %vm229 = vcmp.lt.s32.totalorder %v209, 2
    %vm230 = vcmp.lt.s32.totalorder %v209, 3
    %vm231 = vcmp.lt.s32.totalorder %v209, 4
    %v232 = vsel %vm228, %v212, %v215
    %v233 = vsel %vm231, %v221, 2102212464
    %v234 = vsel %vm230, %v218, %v233
    %v235 = vsel %vm229, %v232, %v234
    %v236 = vsel %vm228, %v215, %v218
    %v237 = vsel %vm231, %v224, 920167782
    %v238 = vsel %vm230, %v221, %v237
    %v239 = vsel %vm229, %v236, %v238
    %v240 = vsel %vm228, %v218, %v221
    %v241 = vsel %vm231, %v227, 1326507024
    %v242 = vsel %vm230, %v224, %v241
    %v243 = vsel %vm229, %v240, %v242
    %v244 = vshll.u32 %v204, 8
    %v245 = vand.u32 %v244, 65535
    %v246 = vshrl.u32 %v244, 16
    %v247 = vand.u32 %v243, 65535
    %v248 = vshrl.u32 %v243, 16
    %v249 = vmul.u32 %v245, %v247
    %v250 = vmul.u32 %v245, %v248
    %v251 = vmul.u32 %v246, %v247
    %v252 = vmul.u32 %v246, %v248
    %v253 = vshll.u32 %v250, 16
    %v254 = vshrl.u32 %v250, 16
    %v255 = vshll.u32 %v251, 16
    %v256 = vshrl.u32 %v251, 16
    %vm257 = vc.u32 %v249, %v253
    %v258 = vsel %vm257, 1, 0
    %v259 = vadd.s32 %v249, %v253
    %v260 = vadd.s32 %v252, %v258
    %vm261 = vc.u32 %v259, %v255
    %v262 = vsel %vm261, 1, 0
    %v263 = vadd.s32 %v259, %v255
    %v264 = vadd.s32 %v260, %v262
    %v265 = vadd.s32 %v264, %v254
    %v266 = vadd.s32 %v265, %v256
    %v267 = vand.u32 %v244, 65535
    %v268 = vshrl.u32 %v244, 16
    %v269 = vand.u32 %v239, 65535
    %v270 = vshrl.u32 %v239, 16
    %v271 = vmul.u32 %v267, %v269
    %v272 = vmul.u32 %v267, %v270
    %v273 = vmul.u32 %v268, %v269
    %v274 = vmul.u32 %v268, %v270
    %v275 = vshll.u32 %v272, 16
    %v276 = vshrl.u32 %v272, 16
    %v277 = vshll.u32 %v273, 16
    %v278 = vshrl.u32 %v273, 16
    %vm279 = vc.u32 %v271, %v275
    %v280 = vsel %vm279, 1, 0
    %v281 = vadd.s32 %v271, %v275
    %v282 = vadd.s32 %v274, %v280
    %vm283 = vc.u32 %v281, %v277
    %v284 = vsel %vm283, 1, 0
    %v285 = vadd.s32 %v281, %v277
    %v286 = vadd.s32 %v282, %v284
    %v287 = vadd.s32 %v286, %v276
    %v288 = vadd.s32 %v287, %v278
    %v289 = vmul.u32 %v244, %v235
    %v290 = vadd.s32 %v266, %v285
    %vm291 = vc.u32 %v266, %v285
    %v292 = vadd.s32 %v288, 1
    %v293 = vsel %vm291, %v292, %v288
    %v294 = vadd.s32 %v289, %v293
    %v295 = vadd.s32 %v294, 536870912
    %v296 = vshrl.u32 %v295, 30
    %v297 = vshll.u32 %v296, 30
    %v298 = vsub.s32 %v294, %v297
    %vm299 = vcmp.lt.s32.totalorder %v298, 0
    %v300 = vsub.s32 0, %v298
    %v301 = vsel %vm299, %v300, %v298
    %v302 = vclz %v301
    %v303 = vsub.s32 %v302, 2
    %vm304 = vcmp.gt.s32.totalorder 0, %v303
    %v305 = vsel %vm304, 0, %v303
    %v306 = vsub.s32 32, %v305
    %v307 = vshll.u32 %v298, %v305
    %v308 = vshrl.u32 %v290, %v306
    %v309 = vor.u32 %v307, %v308
    %v310 = vsub.s32 4294967266, %v305
    %v311 = vadd.s32 %v310, 127
    %v312 = vshll.u32 %v311, 23
    %v313 = vor.u32 4788187, %v312
    %v314 = vand.u32 2147483647, %v313
    %v316 = vcvt.s32.f32 %v309
    %v317 = vmul.f32 %v316, %v314
    %v318 = vxor.u32 %v317, 2147483648
    %v319 = vsel %vm198, %v318, %v317
    %v320 = vsub.s32 4, %v296
    %v321 = vsel %vm198, %v320, %v296
    %v322 = vsel %vm197, %v193, %v319
    %v323 = vsel %vm197, 0, %v321
    %v324 = vmul.f32 %v322, %v322
    %v325 = vmul.f32 %v324, -0.001358992
    %v326 = vadd.f32 %v325, 0.041655596
    %v327 = vmul.f32 %v324, %v326
    %v328 = vadd.f32 %v327, -0.4999988
    %v329 = vmul.f32 %v324, %v328
    %v330 = vadd.f32 1.0, %v329
    %v331 = vmul.f32 %v322, %v322
    %v332 = vmul.f32 %v331, -0.00019511016
    %v333 = vadd.f32 %v332, 0.008332121
    %v334 = vmul.f32 %v331, %v333
    %v335 = vadd.f32 %v334, -0.16666654
    %v336 = vmul.f32 %v331, %v335
    %v337 = vadd.f32 %v336, 1.0
    %v338 = vmul.f32 %v337, %v322
    %vm339 = vweird.f32 %v193
    %v340 = vand.u32 %v323, 3
    %vm341 = vcmp.lt.s32.totalorder %v340, 2
    %vm342 = vcmp.eq.s32.totalorder %v340, 0
    %v343 = vxor.u32 %v338, 2147483648
    %v344 = vsel %vm342, %v330, %v343
    %vm345 = vcmp.eq.s32.totalorder %v340, 2
    %v346 = vxor.u32 %v330, 2147483648
    %v347 = vsel %vm345, %v346, %v338
    %v348 = vsel %vm341, %v344, %v347
    %v349 = vsel %vm339, nan, %v348
    %v350 = vpack.c.bf16 %v349, %v349
    %v351 = vld [vmem:[#allocation2] sm:$0xf]
    %v352 = vld [vmem:[#allocation2 + $0x4] sm:$0xf]
    %v353 = vld [vmem:[#allocation2 + $0x8] sm:$0xf]
    %v354 = vld [vmem:[#allocation2 + $0xc] sm:$0xf]
    %v355 = vld [vmem:[#allocation2 + $0x10] sm:$0xf]
    %v356 = vld [vmem:[#allocation2 + $0x14] sm:$0xf]
    %v357 = vld [vmem:[#allocation2 + $0x18] sm:$0xf]
    %v358 = vld [vmem:[#allocation2 + $0x1c] sm:$0xf]
    %v359 = vld [vmem:[#allocation2 + $0x20] sm:$0xf]
    %v360 = vld [vmem:[#allocation2 + $0x24] sm:$0xf]
    %v361 = vld [vmem:[#allocation2 + $0x28] sm:$0xf]
    %v362 = vld [vmem:[#allocation2 + $0x2c] sm:$0xf]
    %v363 = vld [vmem:[#allocation2 + $0x30] sm:$0xf]
    %v364 = vld [vmem:[#allocation2 + $0x34] sm:$0xf]
    %v365 = vld [vmem:[#allocation2 + $0x38] sm:$0xf]
    %v366 = vld [vmem:[#allocation2 + $0x3c] sm:$0xf]
    %v367 = vld [vmem:[%s7] sm:$0x1]
    %v369 = vperm.slane %v367, 0
    %v387 = vunpack.c.l.b16 %v351
    %v388 = vunpack.c.l.b16 %v352
    %v389 = vunpack.c.l.b16 %v353
    %v390 = vunpack.c.l.b16 %v354
    %v391 = vunpack.c.l.b16 %v355
    %v392 = vunpack.c.l.b16 %v356
    %v393 = vunpack.c.l.b16 %v357
    %v394 = vunpack.c.l.b16 %v358
    %v395 = vunpack.c.l.b16 %v359
    %v396 = vunpack.c.l.b16 %v360
    %v397 = vunpack.c.l.b16 %v361
    %v398 = vunpack.c.l.b16 %v362
    %v399 = vunpack.c.l.b16 %v363
    %v400 = vunpack.c.l.b16 %v364
    %v401 = vunpack.c.l.b16 %v365
    %v402 = vunpack.c.l.b16 %v366
    %v403 = vpack.c.b16 %v388, %v387
    %v404 = vpack.c.b16 %v390, %v389
    %v405 = vpack.c.b16 %v392, %v391
    %v406 = vpack.c.b16 %v394, %v393
    %v407 = vpack.c.b16 %v396, %v395
    %v408 = vpack.c.b16 %v398, %v397
    %v409 = vpack.c.b16 %v400, %v399
    %v410 = vpack.c.b16 %v402, %v401
    %419 = vmatpush.bf16.msra.mxu0 %v410
    %420 = vmatpush.bf16.msra.mxu0 %v409
    %421 = vmatpush.bf16.msra.mxu0 %v408
    %422 = vmatpush.bf16.msra.mxu0 %v407
    %423 = vmatpush.bf16.msra.mxu0 %v406
    %424 = vmatpush.bf16.msra.mxu0 %v405
    %425 = vmatpush.bf16.msra.mxu0 %v404
    %426 = vmatpush.bf16.msra.mxu0 %v403
    %427 = vmatmul.bf16.gmra.mxu0 %v350
    %v428 = vpop.f32.mrf.mxu0
    %v429 = vadd.f32 %v369, %v428
    %v430 = vpop.f32.mrf.mxu0
    %431 = vdwg.mxu0
    %432 = vst [vmem:[%s9] sm:$0xff] %v429
    %433 = vxpose.xlu0.b32.start [1/16] %v349, 128
    %434 = vxpose.xlu0.b32.cont [2/16] 0.0, 128
    %435 = vxpose.xlu0.b32.cont [3/16] 0.0, 128
    %436 = vxpose.xlu0.b32.cont [4/16] 0.0, 128
    %437 = vxpose.xlu0.b32.cont [5/16] 0.0, 128
    %438 = vxpose.xlu0.b32.cont [6/16] 0.0, 128
    %439 = vxpose.xlu0.b32.cont [7/16] 0.0, 128
    %440 = vxpose.xlu0.b32.cont [8/16] 0.0, 128
    %441 = vxpose.xlu0.b32.cont [9/16] 0.0, 128
    %442 = vxpose.xlu0.b32.cont [10/16] 0.0, 128
    %443 = vxpose.xlu0.b32.cont [11/16] 0.0, 128
    %444 = vxpose.xlu0.b32.cont [12/16] 0.0, 128
    %445 = vxpose.xlu0.b32.cont [13/16] 0.0, 128
    %446 = vxpose.xlu0.b32.cont [14/16] 0.0, 128
    %447 = vxpose.xlu0.b32.cont [15/16] 0.0, 128
    %448 = vxpose.xlu0.b32.end [16/16] 0.0, 128
    %v449 = vpop.trf.xlu0
    %v450 = vpop.trf.xlu0
    %v451 = vpop.trf.xlu0
    %v452 = vpop.trf.xlu0
    %v453 = vpop.trf.xlu0
    %v454 = vpop.trf.xlu0
    %v455 = vpop.trf.xlu0
    %v456 = vpop.trf.xlu0
    %v457 = vpop.trf.xlu0
    %v458 = vpop.trf.xlu0
    %v459 = vpop.trf.xlu0
    %v460 = vpop.trf.xlu0
    %v461 = vpop.trf.xlu0
    %v462 = vpop.trf.xlu0
    %v463 = vpop.trf.xlu0
    %v464 = vpop.trf.xlu0
    %vm465 = vcmask 64512
    %v467 = vsel %vm465, %v449, 0
    %v470 = vsel %vm465, %v450, 0
    %v473 = vsel %vm465, %v451, 0
    %v476 = vsel %vm465, %v452, 0
    %v479 = vsel %vm465, %v453, 0
    %v482 = vsel %vm465, %v454, 0
    %v485 = vsel %vm465, %v455, 0
    %v488 = vsel %vm465, %v456, 0
    %v491 = vsel %vm465, %v457, 0
    %v494 = vsel %vm465, %v458, 0
    %v497 = vsel %vm465, %v459, 0
    %v500 = vsel %vm465, %v460, 0
    %v503 = vsel %vm465, %v461, 0
    %v506 = vsel %vm465, %v462, 0
    %v509 = vsel %vm465, %v463, 0
    %v512 = vsel %vm465, %v464, 0
    %514 = vmatpush.msra.mxu0 0.0
    %515 = vmatpush.msra.mxu0 0.0
    %516 = vmatpush.msra.mxu0 0.0
    %517 = vmatpush.msra.mxu0 0.0
    %518 = vmatpush.msra.mxu0 0.0
    %519 = vmatpush.msra.mxu0 0.0
    %520 = vmatpush.msra.mxu0 0.0
    %521 = vmatpush.msra.mxu0 0.0
    %522 = vmatpush.msra.mxu0 0.0
    %523 = vmatpush.msra.mxu0 0.0
    %524 = vmatpush.msra.mxu0 0.0
    %525 = vmatpush.msra.mxu0 0.0
    %526 = vmatpush.msra.mxu0 0.0
    %527 = vmatpush.msra.mxu0 0.0
    %528 = vmatpush.msra.mxu0 0.0
    %529 = vmatpush.msra.mxu0 %v349
    %530 = vmatmul.f32.gmra.mxu0 %v467
    %v531 = vpop.f32.mrf.mxu0
    %v532 = vadd.f32 0.0, %v531
    %533 = vmatmul.f32.gmra.mxu0 %v470
    %v534 = vpop.f32.mrf.mxu0
    %v535 = vadd.f32 0.0, %v534
    %536 = vmatmul.f32.gmra.mxu0 %v473
    %v537 = vpop.f32.mrf.mxu0
    %v538 = vadd.f32 0.0, %v537
    %539 = vmatmul.f32.gmra.mxu0 %v476
    %v540 = vpop.f32.mrf.mxu0
    %v541 = vadd.f32 0.0, %v540
    %542 = vmatmul.f32.gmra.mxu0 %v479
    %v543 = vpop.f32.mrf.mxu0
    %v544 = vadd.f32 0.0, %v543
    %545 = vmatmul.f32.gmra.mxu0 %v482
    %v546 = vpop.f32.mrf.mxu0
    %v547 = vadd.f32 0.0, %v546
    %548 = vmatmul.f32.gmra.mxu0 %v485
    %v549 = vpop.f32.mrf.mxu0
    %v550 = vadd.f32 0.0, %v549
    %551 = vmatmul.f32.gmra.mxu0 %v488
    %v552 = vpop.f32.mrf.mxu0
    %v553 = vadd.f32 0.0, %v552
    %554 = vmatmul.f32.gmra.mxu0 %v491
    %v555 = vpop.f32.mrf.mxu0
    %v556 = vadd.f32 0.0, %v555
    %557 = vmatmul.f32.gmra.mxu0 %v494
    %v558 = vpop.f32.mrf.mxu0
    %v559 = vadd.f32 0.0, %v558
    %560 = vmatmul.f32.gmra.mxu0 %v497
    %v561 = vpop.f32.mrf.mxu0
    %v562 = vadd.f32 0.0, %v561
    %563 = vmatmul.f32.gmra.mxu0 %v500
    %v564 = vpop.f32.mrf.mxu0
    %v565 = vadd.f32 0.0, %v564
    %566 = vmatmul.f32.gmra.mxu0 %v503
    %v567 = vpop.f32.mrf.mxu0
    %v568 = vadd.f32 0.0, %v567
    %569 = vmatmul.f32.gmra.mxu0 %v506
    %v570 = vpop.f32.mrf.mxu0
    %v571 = vadd.f32 0.0, %v570
    %572 = vmatmul.f32.gmra.mxu0 %v509
    %v573 = vpop.f32.mrf.mxu0
    %v574 = vadd.f32 0.0, %v573
    %575 = vmatmul.f32.gmra.mxu0 %v512
    %v576 = vpop.f32.mrf.mxu0
    %v577 = vadd.f32 0.0, %v576
    %578 = vdwg.mxu0
    %v579 = vmul.f32 %v532, 0.125
    %v580 = vmul.f32 %v535, 0.125
    %v581 = vmul.f32 %v538, 0.125
    %v582 = vmul.f32 %v541, 0.125
    %v583 = vmul.f32 %v544, 0.125
    %v584 = vmul.f32 %v547, 0.125
    %v585 = vmul.f32 %v550, 0.125
    %v586 = vmul.f32 %v553, 0.125
    %v587 = vmul.f32 %v556, 0.125
    %v588 = vmul.f32 %v559, 0.125
    %v589 = vmul.f32 %v562, 0.125
    %v590 = vmul.f32 %v565, 0.125
    %v591 = vmul.f32 %v568, 0.125
    %v592 = vmul.f32 %v571, 0.125
    %v593 = vmul.f32 %v574, 0.125
    %v594 = vmul.f32 %v577, 0.125
    %v595 = vld [vmem:[#allocation5] sm:$0xff]
    %v596 = vld [vmem:[#allocation5 + $0x8] sm:$0xff]
    %v597 = vld [vmem:[#allocation5 + $0x10] sm:$0xff]
    %v598 = vld [vmem:[#allocation5 + $0x18] sm:$0xff]
    %v599 = vld [vmem:[#allocation5 + $0x20] sm:$0xff]
    %v600 = vld [vmem:[#allocation5 + $0x28] sm:$0xff]
    %v601 = vld [vmem:[#allocation5 + $0x30] sm:$0xff]
    %v602 = vld [vmem:[#allocation5 + $0x38] sm:$0xff]
    %v603 = vld [vmem:[#allocation5 + $0x40] sm:$0xff]
    %v604 = vld [vmem:[#allocation5 + $0x48] sm:$0xff]
    %v605 = vld [vmem:[#allocation5 + $0x50] sm:$0xff]
    %v606 = vld [vmem:[#allocation5 + $0x58] sm:$0xff]
    %v607 = vld [vmem:[#allocation5 + $0x60] sm:$0xff]
    %v608 = vld [vmem:[#allocation5 + $0x68] sm:$0xff]
    %v609 = vld [vmem:[#allocation5 + $0x70] sm:$0xff]
    %v610 = vld [vmem:[#allocation5 + $0x78] sm:$0xff]
    %v611 = vmul.f32 %v595, 0.999
    %v612 = vmul.f32 %v596, 0.999
    %v613 = vmul.f32 %v597, 0.999
    %v614 = vmul.f32 %v598, 0.999
    %v615 = vmul.f32 %v599, 0.999
    %v616 = vmul.f32 %v600, 0.999
    %v617 = vmul.f32 %v601, 0.999
    %v618 = vmul.f32 %v602, 0.999
    %v619 = vmul.f32 %v603, 0.999
    %v620 = vmul.f32 %v604, 0.999
    %v621 = vmul.f32 %v605, 0.999
    %v622 = vmul.f32 %v606, 0.999
    %v623 = vmul.f32 %v607, 0.999
    %v624 = vmul.f32 %v608, 0.999
    %v625 = vmul.f32 %v609, 0.999
    %v626 = vmul.f32 %v610, 0.999
    %v627 = vmul.f32 %v579, 0.001
    %v628 = vmul.f32 %v580, 0.001
    %v629 = vmul.f32 %v581, 0.001
    %v630 = vmul.f32 %v582, 0.001
    %v631 = vmul.f32 %v583, 0.001
    %v632 = vmul.f32 %v584, 0.001
    %v633 = vmul.f32 %v585, 0.001
    %v634 = vmul.f32 %v586, 0.001
    %v635 = vmul.f32 %v587, 0.001
    %v636 = vmul.f32 %v588, 0.001
    %v637 = vmul.f32 %v589, 0.001
    %v638 = vmul.f32 %v590, 0.001
    %v639 = vmul.f32 %v591, 0.001
    %v640 = vmul.f32 %v592, 0.001
    %v641 = vmul.f32 %v593, 0.001
    %v642 = vmul.f32 %v594, 0.001
    %v643 = vadd.f32 %v611, %v627
    %v644 = vadd.f32 %v612, %v628
    %v645 = vadd.f32 %v613, %v629
    %v646 = vadd.f32 %v614, %v630
    %v647 = vadd.f32 %v615, %v631
    %v648 = vadd.f32 %v616, %v632
    %v649 = vadd.f32 %v617, %v633
    %v650 = vadd.f32 %v618, %v634
    %v651 = vadd.f32 %v619, %v635
    %v652 = vadd.f32 %v620, %v636
    %v653 = vadd.f32 %v621, %v637
    %v654 = vadd.f32 %v622, %v638
    %v655 = vadd.f32 %v623, %v639
    %v656 = vadd.f32 %v624, %v640
    %v657 = vadd.f32 %v625, %v641
    %v658 = vadd.f32 %v626, %v642
    %659 = vst [vmem:[#allocation7] sm:$0xff] %v643
    %660 = vst [vmem:[#allocation7 + $0x8] sm:$0xff] %v644
    %661 = vst [vmem:[#allocation7 + $0x10] sm:$0xff] %v645
    %662 = vst [vmem:[#allocation7 + $0x18] sm:$0xff] %v646
    %663 = vst [vmem:[#allocation7 + $0x20] sm:$0xff] %v647
    %664 = vst [vmem:[#allocation7 + $0x28] sm:$0xff] %v648
    %665 = vst [vmem:[#allocation7 + $0x30] sm:$0xff] %v649
    %666 = vst [vmem:[#allocation7 + $0x38] sm:$0xff] %v650
    %667 = vst [vmem:[#allocation7 + $0x40] sm:$0xff] %v651
    %668 = vst [vmem:[#allocation7 + $0x48] sm:$0xff] %v652
    %669 = vst [vmem:[#allocation7 + $0x50] sm:$0xff] %v653
    %670 = vst [vmem:[#allocation7 + $0x58] sm:$0xff] %v654
    %671 = vst [vmem:[#allocation7 + $0x60] sm:$0xff] %v655
    %672 = vst [vmem:[#allocation7 + $0x68] sm:$0xff] %v656
    %673 = vst [vmem:[#allocation7 + $0x70] sm:$0xff] %v657
    %674 = vst [vmem:[#allocation7 + $0x78] sm:$0xff] %v658
    // Predicated region
    $region46: #{sngp_forward.1} parent=1 // pred_check
      _
    $region47: #{sngp_forward.1} parent=1 // pred_check_branch
      %676 = sbr.rel (0) target = $region49
    $region48: #{sngp_forward.1} parent=1 // pred_region
      _
    $region49: #{sngp_forward.1} parent=1 // pred_fallthru
      _
    // Predicated region
    $region50: #{sngp_forward.1} parent=1 // pred_check
      _
    $region51: #{sngp_forward.1} parent=1 // pred_check_branch
      %678 = sbr.rel (0) target = $region53
    $region52: #{sngp_forward.1} parent=1 // pred_region
      %680 = vsyncadd [#allocation4], 0
      %s681 = sshll.u32 [#allocation7], 4
      %s682 = int_to_ptr.vmem [resolvable:$true] %s681
      %s683 = sshll.u32 %s10, 4
      %s684 = int_to_ptr.hbm [resolvable:$true] %s683
      %689 = dma.vmem_to_hbm [thread:$0]  %s682, 2048, %s684, [#allocation4], 128, 128, 8
    $region53: #{sngp_forward.1} parent=1 // pred_fallthru
      _
    // Predicated region
    $region54: #{sngp_forward.1} parent=1 // pred_check
      _
    $region55: #{sngp_forward.1} parent=1 // pred_check_branch
      %691 = sbr.rel (0) target = $region57
    $region56: #{sngp_forward.1} parent=1 // pred_region
      _
    $region57: #{sngp_forward.1} parent=1 // pred_fallthru
      _
    // Predicated region
    $region58: #{sngp_forward.1} parent=1 // pred_check
      _
    $region59: #{sngp_forward.1} parent=1 // pred_check_branch
      %693 = sbr.rel (0) target = $region61
    $region60: #{sngp_forward.1} parent=1 // pred_region
      %695 = dma.done [#allocation4], 2048
    $region61: #{sngp_forward.1} parent=1 // pred_fallthru
      _
    %696 = vsyncpa [#allocation3], 1
    %697 = vsyncpa [#allocation6], 1
    %698 = vsyncpa [#allocation4], 1

</llo_original>
